<compile_context>
chip_gen: v7x
topology: tpu7x:2x2x1
jax: 0.10.0
libtpu: 0.0.40
codegen_flags: <defaults>
</compile_context>

<pallas_src>
import jax
import jax.numpy as jnp
from jax import lax
from jax.experimental import pallas as pl
from jax.experimental.pallas import tpu as pltpu


def _round_up(n: int, m: int) -> int:
    return ((n + m - 1) // m) * m


def _linear_kernel(x_ref, w_ref, b_ref, o_ref):
    # x_ref: (TM, H), w_ref: (C_pad, H)  -> contract on H (trans_b), MXU matmul.
    acc = lax.dot_general(
        x_ref[...],
        w_ref[...],
        dimension_numbers=(((1,), (1,)), ((), ())),
        preferred_element_type=jnp.float32,
    )
    o_ref[...] = (acc + b_ref[...]).astype(o_ref.dtype)


def early_exit_layer(x, weight, bias, *, block_m: int = 512, compute_dtype=None,
                     min_pallas_tokens: int = 0):
    """Pallas implementation of EarlyExitLayer.forward.

    x:      (batch, seq, hidden)   float32
    weight: (num_classes, hidden)  float32  (PyTorch Linear layout, NOT transposed)
    bias:   (num_classes,)         float32
    compute_dtype: optional dtype for the matmul inputs (use jnp.bfloat16 on
                   v6e/v7x for the HBM-bound path); accumulation stays f32.
    returns (batch, seq, num_classes)
    """
    B, S, H = x.shape
    C = weight.shape[0]
    M = B * S
    out_dtype = x.dtype

    # Tiny-problem escape hatch: below this token count the Pallas call is pure
    # launch/DMA overhead and XLA's fused GEMM wins. Default 0 so the kernel is
    # always exercised in this script.
    if M < min_pallas_tokens:
        return (x @ weight.T + bias).astype(out_dtype)

    # --- layout / padding (glue in plain JAX) -------------------------------
    # Lane-dense output: pad num_classes up to a multiple of 128.
    C_pad = _round_up(C, 128)
    # Tile over M; pad M so the grid divides exactly (no ragged last tile).
    TM = min(block_m, _round_up(M, 8))
    M_pad = _round_up(M, TM)
    grid_m = M_pad // TM

    x2d = x.reshape(M, H)
    if M_pad != M:
        x2d = jnp.pad(x2d, ((0, M_pad - M), (0, 0)))
    w_pad = jnp.pad(weight, ((0, C_pad - C), (0, 0))) if C_pad != C else weight
    b_pad = jnp.pad(bias, (0, C_pad - C)) if C_pad != C else bias
    b_pad = b_pad.reshape(1, C_pad).astype(jnp.float32)

    if compute_dtype is not None:
        x2d = x2d.astype(compute_dtype)
        w_pad = w_pad.astype(compute_dtype)

    itemsize = jnp.dtype(x2d.dtype).itemsize
    cost = pl.CostEstimate(
        flops=2 * M_pad * H * C_pad,
        bytes_accessed=itemsize * (M_pad * H + C_pad * H)
        + jnp.dtype(out_dtype).itemsize * M_pad * C_pad,
        transcendentals=0,
    )

    out = pl.pallas_call(
        _linear_kernel,
        out_shape=jax.ShapeDtypeStruct((M_pad, C_pad), out_dtype),
        grid=(grid_m,),
        in_specs=[
            pl.BlockSpec((TM, H), lambda i: (i, 0)),        # x tile, pipelined
            pl.BlockSpec((C_pad, H), lambda i: (0, 0)),     # weight, VMEM-resident
            pl.BlockSpec((1, C_pad), lambda i: (0, 0)),     # bias, VMEM-resident
        ],
        out_specs=pl.BlockSpec((TM, C_pad), lambda i: (i, 0)),
        compiler_params=pltpu.CompilerParams(
            dimension_semantics=("parallel",),              # megacore on v7x
            vmem_limit_bytes=64 << 20,
        ),
        cost_estimate=cost,
    )(x2d, w_pad, b_pad)

    # Slice off M / C padding and restore (batch, seq, num_classes).
    return out[:M, :C].reshape(B, S, C)


if __name__ == "__main__":
    # Small shapes consistent with a ViT token stream feeding the early exit.
    batch, seq, hidden, num_classes = 2, 8, 32, 16

    key = jax.random.PRNGKey(0)
    kx, kw, kb = jax.random.split(key, 3)

    x = jax.random.normal(kx, (batch, seq, hidden), dtype=jnp.float32)
    # Deterministic parameter init (nn.Linear-like uniform scale).
    bound = 1.0 / (hidden ** 0.5)
    weight = jax.random.uniform(kw, (num_classes, hidden), jnp.float32, -bound, bound)
    bias = jax.random.uniform(kb, (num_classes,), jnp.float32, -bound, bound)

    # f32 compute here so the tight tolerance check is meaningful; on v6e/v7x
    # pass compute_dtype=jnp.bfloat16 for the bandwidth-bound production path.
    y = early_exit_layer(x, weight, bias)
    y = jax.block_until_ready(y)

    # Reference check against plain JAX (same math as torch Linear).
    y_ref = x @ weight.T + bias
    assert y.shape == (batch, seq, num_classes)
    assert jnp.allclose(y, y_ref, atol=1e-5, rtol=1e-5)

    print("KERNEL_OK")
</pallas_src>

<mosaic_0001>
module attributes {stable_mosaic.version = 11 : i64} {
  func.func @_linear_kernel(%arg0: i32, %arg1: memref<16x32xf32, #tpu.memory_space<vmem>>, %arg2: memref<128x32xf32, #tpu.memory_space<vmem>>, %arg3: memref<1x128xf32, #tpu.memory_space<vmem>>, %arg4: memref<16x128xf32, #tpu.memory_space<vmem>>) attributes {dimension_semantics = [#tpu.dimension_semantics<parallel>], iteration_bounds = array<i64: 1>, scalar_prefetch = 0 : i64, scratch_operands = 0 : i64, tpu.core_type = #tpu.core_type<tc>, window_params = [{transform_indices = @transform_0, window_bounds = array<i64: 16, 32>}, {pipeline_mode = #tpu.pipeline_mode<synchronous>, transform_indices = @transform_1, window_bounds = array<i64: 128, 32>}, {pipeline_mode = #tpu.pipeline_mode<synchronous>, transform_indices = @transform_2, window_bounds = array<i64: 1, 128>}, {transform_indices = @transform_3, window_bounds = array<i64: 16, 128>}]} {
    %c0 = arith.constant 0 : index
    %c0_0 = arith.constant 0 : index
    %0 = vector.load %arg1[%c0, %c0_0] : memref<16x32xf32, #tpu.memory_space<vmem>>, vector<16x32xf32>
    %c0_1 = arith.constant 0 : index
    %c0_2 = arith.constant 0 : index
    %1 = vector.load %arg2[%c0_1, %c0_2] : memref<128x32xf32, #tpu.memory_space<vmem>>, vector<128x32xf32>
    %cst = arith.constant dense<0.000000e+00> : vector<16x128xf32>
    %2 = tpu.matmul %0, %1, %cst {dimension_numbers = #tpu.dot_dimension_numbers<[1], [1], [0], [0], [0, 0, 1, 0], [], []>} : vector<16x32xf32>, vector<128x32xf32>, vector<16x128xf32> -> vector<16x128xf32>
    %c0_3 = arith.constant 0 : index
    %c0_4 = arith.constant 0 : index
    %3 = vector.load %arg3[%c0_3, %c0_4] : memref<1x128xf32, #tpu.memory_space<vmem>>, vector<1x128xf32>
    %4 = vector.broadcast %3 : vector<1x128xf32> to vector<16x128xf32>
    %5 = arith.addf %2, %4 : vector<16x128xf32>
    %c0_5 = arith.constant 0 : index
    %c0_6 = arith.constant 0 : index
    %6 = vector.load %arg4[%c0_5, %c0_6] : memref<16x128xf32, #tpu.memory_space<vmem>>, vector<16x128xf32>
    tpu.vector_store %arg4[%c0_5, %c0_6], %5 {strides = array<i32>} : memref<16x128xf32, #tpu.memory_space<vmem>>, vector<16x128xf32>,
    return
  }
  func.func @transform_0(%arg0: i32) -> (i32, i32) {
    %c0_i32 = arith.constant 0 : i32
    %c0_i32_0 = arith.constant 0 : i32
    return %arg0, %c0_i32 : i32, i32
  }
  func.func @transform_1(%arg0: i32) -> (i32, i32) {
    %c0_i32 = arith.constant 0 : i32
    %c0_i32_0 = arith.constant 0 : i32
    %c0_i32_1 = arith.constant 0 : i32
    return %c0_i32, %c0_i32_0 : i32, i32
  }
  func.func @transform_2(%arg0: i32) -> (i32, i32) {
    %c0_i32 = arith.constant 0 : i32
    %c0_i32_0 = arith.constant 0 : i32
    %c0_i32_1 = arith.constant 0 : i32
    return %c0_i32, %c0_i32_0 : i32, i32
  }
  func.func @transform_3(%arg0: i32) -> (i32, i32) {
    %c0_i32 = arith.constant 0 : i32
    %c0_i32_0 = arith.constant 0 : i32
    return %arg0, %c0_i32 : i32, i32
  }
}

</mosaic_0001>

<llo_original>
// kernel: tpu_custom_call.1
$region0: #{tpu_custom_call.1}
  #allocation0 [shape = 'u32[]', space=smem, size = 0x4, offset = 0x4, fixed_abs, tag = 'smem constant byte address 0x4 - core index']
  #allocation1 [shape = 'u32[144,128]{1,0:T(1,128)}', space=vmem, size = 0x12000, scoped, tag = 'internal scratch']
  %s0 = inlined_call_operand.hbm [shape: f32[16,32], index: 0, kind: input, shape index: {}]
  %s1 = inlined_call_operand.hbm [shape: f32[128,32], index: 1, kind: input, shape index: {}]
  %s2 = inlined_call_operand.hbm [shape: f32[1,128], index: 2, kind: input, shape index: {}]
  %s3 = inlined_call_operand.hbm [shape: f32[16,128], index: 3, kind: output, shape index: {}]
  %s4 = sld [smem:[#allocation0]]
  $region34: #{tpu_custom_call.1} parent=0
    _
  %s6 = ssub.s32 1, %s4
  %s7 = scalar_select 0, %s6, %s4
  $region1: #{tpu_custom_call.1} parent=0
    #allocation2 [shape = 'u8[8192]{0}', space=vmem, size = 0x2000, scoped, tag = 'input window, operand 0, single buffered']
    #allocation3 [shape = 's32[1]{0}', space=sflag, size = 0x4, scoped, tag = 'scoped memory for tpu_custom_call.1']
    #allocation4 [shape = 's32[1]{0}', space=sflag, size = 0x4, scoped, tag = 'scoped memory for tpu_custom_call.1']
    #allocation5 [shape = 'u8[65536]{0}', space=vmem, size = 0x10000, scoped, tag = 'input window, operand 1, single buffered']
    #allocation6 [shape = 's32[1]{0}', space=sflag, size = 0x4, scoped, tag = 'scoped memory for tpu_custom_call.1']
    #allocation7 [shape = 'u8[512]{0}', space=vmem, size = 0x400, scoped, tag = 'input window, operand 2, single buffered']
    #allocation8 [shape = 'u8[8192]{0}', space=vmem, size = 0x2000, scoped, tag = 'output window, operand 0, single buffered']
    %8 = vsyncpa [#allocation3], 0
    %9 = vsyncpa [#allocation6], 0
    %10 = vsyncpa [#allocation4], 0
    // Predicated region
    $region2: #{tpu_custom_call.1} parent=1 // pred_check
      _
    $region3: #{tpu_custom_call.1} parent=1 // pred_check_branch
      %12 = sbr.rel (0) target = $region5
    $region4: #{tpu_custom_call.1} parent=1 // pred_region
      %s14 = ssub.s32 256, 256
      %15 = vsyncadd [#allocation3], %s14
      %s16 = sshll.u32 [#allocation2], 4
      %s17 = int_to_ptr.vmem [resolvable:$true] %s16
      %22 = dma.hbm_to_vmem [thread:$0]  %s0, 256, %s17, [#allocation3], 128, 128, 8
    $region5: #{tpu_custom_call.1} parent=1 // pred_fallthru
      _
    // Predicated region
    $region6: #{tpu_custom_call.1} parent=1 // pred_check
      _
    $region7: #{tpu_custom_call.1} parent=1 // pred_check_branch
      %24 = sbr.rel (0) target = $region9
    $region8: #{tpu_custom_call.1} parent=1 // pred_region
      %s26 = ssub.s32 2048, 2048
      %27 = vsyncadd [#allocation6], %s26
      %s28 = sshll.u32 [#allocation5], 4
      %s29 = int_to_ptr.vmem [resolvable:$true] %s28
      %34 = dma.hbm_to_vmem [thread:$0]  %s1, 2048, %s29, [#allocation6], 128, 128, 8
    $region9: #{tpu_custom_call.1} parent=1 // pred_fallthru
      _
    // Predicated region
    $region10: #{tpu_custom_call.1} parent=1 // pred_check
      _
    $region11: #{tpu_custom_call.1} parent=1 // pred_check_branch
      %36 = sbr.rel (0) target = $region13
    $region12: #{tpu_custom_call.1} parent=1 // pred_region
      %s38 = ssub.s32 16, 16
      %39 = vsyncadd [#allocation6], %s38
      %s41 = sshll.u32 [#allocation7], 4
      %s42 = int_to_ptr.vmem [resolvable:$true] %s41
      %44 = dma.hbm_to_vmem [thread:$0]  %s2, 16, %s42, [#allocation6]
    $region13: #{tpu_custom_call.1} parent=1 // pred_fallthru
      _
    // Predicated region
    $region14: #{tpu_custom_call.1} parent=1 // pred_check
      _
    $region15: #{tpu_custom_call.1} parent=1 // pred_check_branch
      %46 = sbr.rel (0) target = $region17
    $region16: #{tpu_custom_call.1} parent=1 // pred_region
      %47 = dma.done [#allocation3], 256
    $region17: #{tpu_custom_call.1} parent=1 // pred_fallthru
      _
    // Predicated region
    $region18: #{tpu_custom_call.1} parent=1 // pred_check
      _
    $region19: #{tpu_custom_call.1} parent=1 // pred_check_branch
      %49 = sbr.rel (0) target = $region21
    $region20: #{tpu_custom_call.1} parent=1 // pred_region
      %50 = dma.done [#allocation6], 2048
    $region21: #{tpu_custom_call.1} parent=1 // pred_fallthru
      _
    // Predicated region
    $region22: #{tpu_custom_call.1} parent=1 // pred_check
      _
    $region23: #{tpu_custom_call.1} parent=1 // pred_check_branch
      %52 = sbr.rel (0) target = $region25
    $region24: #{tpu_custom_call.1} parent=1 // pred_region
      %53 = dma.done [#allocation6], 16
    $region25: #{tpu_custom_call.1} parent=1 // pred_fallthru
      _
    %v54 = vld [vmem:[#allocation2] sm:$0xff]
    %v55 = vld [vmem:[#allocation2 + $0x8] sm:$0xff]
    %v56 = vld [vmem:[#allocation5] sm:$0xff]
    %v57 = vld [vmem:[#allocation5 + $0x8] sm:$0xff]
    %v58 = vld [vmem:[#allocation5 + $0x10] sm:$0xff]
    %v59 = vld [vmem:[#allocation5 + $0x18] sm:$0xff]
    %v60 = vld [vmem:[#allocation5 + $0x20] sm:$0xff]
    %v61 = vld [vmem:[#allocation5 + $0x28] sm:$0xff]
    %v62 = vld [vmem:[#allocation5 + $0x30] sm:$0xff]
    %v63 = vld [vmem:[#allocation5 + $0x38] sm:$0xff]
    %v64 = vld [vmem:[#allocation5 + $0x40] sm:$0xff]
    %v65 = vld [vmem:[#allocation5 + $0x48] sm:$0xff]
    %v66 = vld [vmem:[#allocation5 + $0x50] sm:$0xff]
    %v67 = vld [vmem:[#allocation5 + $0x58] sm:$0xff]
    %v68 = vld [vmem:[#allocation5 + $0x60] sm:$0xff]
    %v69 = vld [vmem:[#allocation5 + $0x68] sm:$0xff]
    %v70 = vld [vmem:[#allocation5 + $0x70] sm:$0xff]
    %v71 = vld [vmem:[#allocation5 + $0x78] sm:$0xff]
    %v72 = vld [vmem:[#allocation7] sm:$0x1]
    %v74 = vlaneseq
    %v75 = vshrl.u32 %v74, 7
    %v76 = vsub.s32 0, %v75
    %v77 = vrot.slane %v72, %v76
    %vm79 = vcmask 261120
    %v81 = vsel %vm79, %v54, 0
    %v84 = vsel %vm79, %v55, 0
    %v87 = vsel %vm79, %v56, 0
    %v90 = vsel %vm79, %v57, 0
    %v93 = vsel %vm79, %v58, 0
    %v96 = vsel %vm79, %v59, 0
    %v99 = vsel %vm79, %v60, 0
    %v102 = vsel %vm79, %v61, 0
    %v105 = vsel %vm79, %v62, 0
    %v108 = vsel %vm79, %v63, 0
    %v111 = vsel %vm79, %v64, 0
    %v114 = vsel %vm79, %v65, 0
    %v117 = vsel %vm79, %v66, 0
    %v120 = vsel %vm79, %v67, 0
    %v123 = vsel %vm79, %v68, 0
    %v126 = vsel %vm79, %v69, 0
    %v129 = vsel %vm79, %v70, 0
    %v132 = vsel %vm79, %v71, 0
    %134 = vmatprep.subr.mxu0 0.0
    %135 = vmatpush1.xpose.msra.mxu0 %v87
    %136 = vmatprep.subr.mxu0 0.0
    %137 = vmatpush1.xpose.msra.mxu0 %v90
    %138 = vmatprep.subr.mxu0 0.0
    %139 = vmatpush1.xpose.msra.mxu0 %v93
    %140 = vmatprep.subr.mxu0 0.0
    %141 = vmatpush1.xpose.msra.mxu0 %v96
    %142 = vmatprep.subr.mxu0 0.0
    %143 = vmatpush1.xpose.msra.mxu0 %v99
    %144 = vmatprep.subr.mxu0 0.0
    %145 = vmatpush1.xpose.msra.mxu0 %v102
    %146 = vmatprep.subr.mxu0 0.0
    %147 = vmatpush1.xpose.msra.mxu0 %v105
    %148 = vmatprep.subr.mxu0 0.0
    %149 = vmatpush1.xpose.msra.mxu0 %v108
    %150 = vmatprep.subr.mxu0 0.0
    %151 = vmatpush1.xpose.msra.mxu0 %v111
    %152 = vmatprep.subr.mxu0 0.0
    %153 = vmatpush1.xpose.msra.mxu0 %v114
    %154 = vmatprep.subr.mxu0 0.0
    %155 = vmatpush1.xpose.msra.mxu0 %v117
    %156 = vmatprep.subr.mxu0 0.0
    %157 = vmatpush1.xpose.msra.mxu0 %v120
    %158 = vmatprep.subr.mxu0 0.0
    %159 = vmatpush1.xpose.msra.mxu0 %v123
    %160 = vmatprep.subr.mxu0 0.0
    %161 = vmatpush1.xpose.msra.mxu0 %v126
    %162 = vmatprep.subr.mxu0 0.0
    %163 = vmatpush1.xpose.msra.mxu0 %v129
    %164 = vmatprep.subr.mxu0 0.0
    %165 = vmatpush1.xpose.msra.mxu0 %v132
    %166 = vmatprep.subr.mxu0 0.0
    %167 = vmatpush1.xpose.msra.mxu0 0.0
    %168 = vmatprep.subr.mxu0 0.0
    %169 = vmatpush1.xpose.msra.mxu0 0.0
    %170 = vmatprep.subr.mxu0 0.0
    %171 = vmatpush1.xpose.msra.mxu0 0.0
    %172 = vmatprep.subr.mxu0 0.0
    %173 = vmatpush1.xpose.msra.mxu0 0.0
    %174 = vmatprep.subr.mxu0 0.0
    %175 = vmatpush1.xpose.msra.mxu0 0.0
    %176 = vmatprep.subr.mxu0 0.0
    %177 = vmatpush1.xpose.msra.mxu0 0.0
    %178 = vmatprep.subr.mxu0 0.0
    %179 = vmatpush1.xpose.msra.mxu0 0.0
    %180 = vmatprep.subr.mxu0 0.0
    %181 = vmatpush1.xpose.msra.mxu0 0.0
    %182 = vmatprep.subr.mxu0 0.0
    %183 = vmatpush1.xpose.msra.mxu0 0.0
    %184 = vmatprep.subr.mxu0 0.0
    %185 = vmatpush1.xpose.msra.mxu0 0.0
    %186 = vmatprep.subr.mxu0 0.0
    %187 = vmatpush1.xpose.msra.mxu0 0.0
    %188 = vmatprep.subr.mxu0 0.0
    %189 = vmatpush1.xpose.msra.mxu0 0.0
    %190 = vmatprep.subr.mxu0 0.0
    %191 = vmatpush1.xpose.msra.mxu0 0.0
    %192 = vmatprep.subr.mxu0 0.0
    %193 = vmatpush1.xpose.msra.mxu0 0.0
    %194 = vmatprep.subr.mxu0 0.0
    %195 = vmatpush1.xpose.msra.mxu0 0.0
    %196 = vmatprep.subr.mxu0 0.0
    %197 = vmatpush1.xpose.msra.mxu0 0.0
    %198 = vmatprep.mubr.f32.mxu0 0.0
    %199 = vmatmul.mubr.f32.gmra.mrb[0].mxu0 %v81
    %v200 = vpop.f32.mrb[0].mxu0
    %v201 = vadd.f32 %v77, %v200
    %v202 = vpop.f32.mrb[0].mxu0
    %203 = vmatprep.mubr.f32.mxu0 0.0
    %204 = vmatmul.mubr.f32.gmra.mrb[0].mxu0 %v84
    %v205 = vpop.f32.mrb[0].mxu0
    %v206 = vadd.f32 %v77, %v205
    %v207 = vpop.f32.mrb[0].mxu0
    %208 = vdwg.mxu0
    %209 = vst [vmem:[#allocation8] sm:$0xff] %v201
    %210 = vst [vmem:[#allocation8 + $0x8] sm:$0xff] %v206
    // Predicated region
    $region26: #{tpu_custom_call.1} parent=1 // pred_check
      _
    $region27: #{tpu_custom_call.1} parent=1 // pred_check_branch
      %212 = sbr.rel (0) target = $region29
    $region28: #{tpu_custom_call.1} parent=1 // pred_region
      %s214 = ssub.s32 256, 256
      %215 = vsyncadd [#allocation4], %s214
      %s216 = sshll.u32 [#allocation8], 4
      %s217 = int_to_ptr.vmem [resolvable:$true] %s216
      %222 = dma.vmem_to_hbm [thread:$0]  %s217, 256, %s3, [#allocation4], 128, 128, 8
    $region29: #{tpu_custom_call.1} parent=1 // pred_fallthru
      _
    // Predicated region
    $region30: #{tpu_custom_call.1} parent=1 // pred_check
      _
    $region31: #{tpu_custom_call.1} parent=1 // pred_check_branch
      %224 = sbr.rel (0) target = $region33
    $region32: #{tpu_custom_call.1} parent=1 // pred_region
      %225 = dma.done [#allocation4], 256
    $region33: #{tpu_custom_call.1} parent=1 // pred_fallthru
      _
    %226 = vsyncpa [#allocation3], 1
    %227 = vsyncpa [#allocation6], 1
    %228 = vsyncpa [#allocation4], 1

</llo_original>
